<compile_context>
chip_gen: v7x
topology: tpu7x:2x2x1
jax: 0.10.0
libtpu: 0.0.40
codegen_flags: <defaults>
</compile_context>

<pallas_src>
import jax
import jax.numpy as jnp
from jax import lax
from jax.experimental import pallas as pl
from jax.experimental.pallas import tpu as pltpu


def _round_up(x, m):
    return (x + m - 1) // m * m


# ----------------------------------------------------------------------------
# Pallas kernel (the entire hot path, one row-block of output per grid step)
# ----------------------------------------------------------------------------

def _dirgcn_kernel(adj_row_ref, adj_col_ref, x_ref, ws_ref, wd_ref, b_ref, o_ref):
    """out_block = (An_rows @ x) @ (a*Ws) + (An_cols^T @ x) @ ((1-a)*Wd) + b_fused.

    adj_row_ref : (tm, Np)  rows    [i*tm, (i+1)*tm) of the dir-normalized adjacency
    adj_col_ref : (Np, tm)  columns [i*tm, (i+1)*tm) of the SAME array
                             (gives the matching rows of An^T without a 2nd HBM copy)
    x_ref       : (Np, Kp)  pre-padded node features, resident across the grid
    ws/wd_ref   : (Kp, Hp)  alpha-folded weights (bf16), resident
    b_ref       : (1,  Hp)  fused bias (f32)
    """
    x = x_ref[...]                                                    # bf16
    ax = jnp.dot(adj_row_ref[...], x, preferred_element_type=jnp.float32)
    # (An^T @ x) for this row block: contract axis 0 of the column block with
    # axis 0 of x (transposed-LHS matmul, handled by the MXU).
    atx = lax.dot_general(adj_col_ref[...], x,
                          dimension_numbers=(((0,), (0,)), ((), ())),
                          preferred_element_type=jnp.float32)
    y = jnp.dot(ax.astype(jnp.bfloat16), ws_ref[...],
                preferred_element_type=jnp.float32)
    y = y + jnp.dot(atx.astype(jnp.bfloat16), wd_ref[...],
                    preferred_element_type=jnp.float32)
    o_ref[...] = y + b_ref[...]                                       # f32 epilogue


def dirgcn_pallas(adj_norm, x, ws_eff, wd_eff, b_eff, *, block_rows=128):
    """Fused DirGCNConv matmul chain with lane-dense padding + bf16 operands."""
    n, k = x.shape
    h = ws_eff.shape[1]

    block_rows = _round_up(block_rows, 128)            # keep tiles lane/sublane aligned
    n_pad = _round_up(n, block_rows)
    k_pad = _round_up(k, 128)
    h_pad = _round_up(h, 128)
    tm = min(block_rows, n_pad)
    assert n_pad % tm == 0

    # zero padding keeps the math exact; padded output rows/cols are sliced off
    adj_p = jnp.zeros((n_pad, n_pad), jnp.float32).at[:n, :n].set(adj_norm)
    x_p = jnp.zeros((n_pad, k_pad), jnp.float32).at[:n, :k].set(x)
    ws_p = jnp.zeros((k_pad, h_pad), jnp.float32).at[:k, :h].set(ws_eff)
    wd_p = jnp.zeros((k_pad, h_pad), jnp.float32).at[:k, :h].set(wd_eff)
    b_p = jnp.zeros((1, h_pad), jnp.float32).at[0, :h].set(b_eff)

    adj_bf = adj_p.astype(jnp.bfloat16)
    x_bf = x_p.astype(jnp.bfloat16)

    out = pl.pallas_call(
        _dirgcn_kernel,
        grid=(n_pad // tm,),
        in_specs=[
            pl.BlockSpec((tm, n_pad), lambda i: (i, 0)),      # adjacency row block
            pl.BlockSpec((n_pad, tm), lambda i: (0, i)),      # adjacency col block (same array)
            pl.BlockSpec((n_pad, k_pad), lambda i: (0, 0)),   # x, resident
            pl.BlockSpec((k_pad, h_pad), lambda i: (0, 0)),   # alpha * Ws, resident
            pl.BlockSpec((k_pad, h_pad), lambda i: (0, 0)),   # (1-alpha) * Wd, resident
            pl.BlockSpec((1, h_pad), lambda i: (0, 0)),       # fused bias
        ],
        out_specs=pl.BlockSpec((tm, h_pad), lambda i: (i, 0)),
        out_shape=jax.ShapeDtypeStruct((n_pad, h_pad), jnp.float32),
        compiler_params=pltpu.CompilerParams(
            # row blocks are independent -> shard across TensorCores on v7x
            dimension_semantics=("parallel",),
            # NOTE: for very large N / tiles on v6e, raise vmem_limit_bytes here.
        ),
    )(adj_bf, adj_bf, x_bf,
      ws_p.astype(jnp.bfloat16), wd_p.astype(jnp.bfloat16), b_p)

    return out[:n, :h]


# ----------------------------------------------------------------------------
# One-time graph preprocessing + param folding (plain JAX glue, not hot path)
# ----------------------------------------------------------------------------

def dense_adj(edge_index, n):
    # NOTE: duplicate edges coalesce to 1 (matches the stated no-duplicate graphs)
    a = jnp.zeros((n, n), jnp.float32)
    return a.at[edge_index[0], edge_index[1]].set(1.0)


def directed_norm_dense(adj):
    """D_out^{-1/2} A D_in^{-1/2} with inf -> 0 (same as directed_norm)."""
    in_deg = adj.sum(axis=0)
    out_deg = adj.sum(axis=1)
    in_inv = jnp.where(in_deg > 0, in_deg ** -0.5, 0.0)
    out_inv = jnp.where(out_deg > 0, out_deg ** -0.5, 0.0)
    return adj * out_inv[:, None] * in_inv[None, :]


def prepare_dirgcn_params(w_s, b_s, w_d, b_d, alpha):
    """Fold alpha / (1-alpha) into the two linear layers (one-time prep)."""
    alpha = jnp.float32(alpha)
    return (alpha * w_s,
            (1.0 - alpha) * w_d,
            alpha * b_s + (1.0 - alpha) * b_d)


def dirgcn_forward(x, edge_index, w_s, b_s, w_d, b_d, alpha, *, block_rows=128):
    n = x.shape[0]
    adj_norm = directed_norm_dense(dense_adj(edge_index, n))
    # directed_norm(A^T) == directed_norm(A)^T, so only adj_norm is materialized;
    # the kernel reads its transpose through a column-block BlockSpec.
    ws_eff, wd_eff, b_eff = prepare_dirgcn_params(w_s, b_s, w_d, b_d, alpha)
    return dirgcn_pallas(adj_norm, x, ws_eff, wd_eff, b_eff, block_rows=block_rows)


# ----------------------------------------------------------------------------
# Pure-JAX f32 reference (mirrors the PyTorch DirGCNConv forward exactly)
# ----------------------------------------------------------------------------

def dirgcn_reference(x, edge_index, w_s, b_s, w_d, b_d, alpha):
    n = x.shape[0]
    adj = dense_adj(edge_index, n)
    an = directed_norm_dense(adj)
    atn = directed_norm_dense(adj.T)
    return (alpha * ((an @ x) @ w_s + b_s)
            + (1.0 - alpha) * ((atn @ x) @ w_d + b_d))


# ----------------------------------------------------------------------------
# main
# ----------------------------------------------------------------------------

if __name__ == "__main__":
    key = jax.random.PRNGKey(0)
    N, K, H = 200, 48, 32        # nodes, input_dim, output_dim
    ALPHA = 0.7

    k0, k1, k2, k3, k4 = jax.random.split(key, 5)
    s = 0.1
    w_s = s * jax.random.normal(k0, (K, H), jnp.float32)
    b_s = s * jax.random.normal(k1, (H,), jnp.float32)
    w_d = s * jax.random.normal(k2, (K, H), jnp.float32)
    b_d = s * jax.random.normal(k3, (H,), jnp.float32)
    x = jax.random.normal(k4, (N, K), jnp.float32)

    # deterministic directed graph: ring + 7-hop shortcuts (no duplicate edges)
    src = jnp.arange(N, dtype=jnp.int32)
    edge_index = jnp.concatenate(
        [jnp.stack([src, (src + 1) % N]),
         jnp.stack([src, (src + 7) % N])], axis=1)

    out = dirgcn_forward(x, edge_index, w_s, b_s, w_d, b_d, ALPHA, block_rows=128)
    out = jax.block_until_ready(out)

    ref = jax.block_until_ready(
        dirgcn_reference(x, edge_index, w_s, b_s, w_d, b_d, ALPHA))

    assert out.shape == (N, H)
    max_err = float(jnp.max(jnp.abs(out - ref)))
    assert jnp.allclose(out, ref, rtol=3e-2, atol=3e-2), \
        f"Pallas vs reference mismatch (max abs err = {max_err})"

    print("KERNEL_OK")
</pallas_src>

<mosaic_0001>
module attributes {stable_mosaic.version = 11 : i64} {
  func.func @_dirgcn_kernel(%arg0: i32, %arg1: memref<128x256xbf16, #tpu.memory_space<vmem>>, %arg2: memref<256x128xbf16, #tpu.memory_space<vmem>>, %arg3: memref<256x128xbf16, #tpu.memory_space<vmem>>, %arg4: memref<128x128xbf16, #tpu.memory_space<vmem>>, %arg5: memref<128x128xbf16, #tpu.memory_space<vmem>>, %arg6: memref<1x128xf32, #tpu.memory_space<vmem>>, %arg7: memref<128x128xf32, #tpu.memory_space<vmem>>) attributes {dimension_semantics = [#tpu.dimension_semantics<parallel>], iteration_bounds = array<i64: 2>, scalar_prefetch = 0 : i64, scratch_operands = 0 : i64, tpu.core_type = #tpu.core_type<tc>, window_params = [{transform_indices = @transform_0, window_bounds = array<i64: 128, 256>}, {transform_indices = @transform_1, window_bounds = array<i64: 256, 128>}, {pipeline_mode = #tpu.pipeline_mode<synchronous>, transform_indices = @transform_2, window_bounds = array<i64: 256, 128>}, {pipeline_mode = #tpu.pipeline_mode<synchronous>, transform_indices = @transform_3, window_bounds = array<i64: 128, 128>}, {pipeline_mode = #tpu.pipeline_mode<synchronous>, transform_indices = @transform_4, window_bounds = array<i64: 128, 128>}, {pipeline_mode = #tpu.pipeline_mode<synchronous>, transform_indices = @transform_5, window_bounds = array<i64: 1, 128>}, {transform_indices = @transform_6, window_bounds = array<i64: 128, 128>}]} {
    %c0 = arith.constant 0 : index
    %c0_0 = arith.constant 0 : index
    %0 = vector.load %arg3[%c0, %c0_0] : memref<256x128xbf16, #tpu.memory_space<vmem>>, vector<256x128xbf16>
    %c0_1 = arith.constant 0 : index
    %c0_2 = arith.constant 0 : index
    %1 = vector.load %arg1[%c0_1, %c0_2] : memref<128x256xbf16, #tpu.memory_space<vmem>>, vector<128x256xbf16>
    %cst = arith.constant dense<0.000000e+00> : vector<128x128xf32>
    %2 = tpu.matmul %1, %0, %cst {dimension_numbers = #tpu.dot_dimension_numbers<[1], [0], [0], [1], [0, 0, 1, 1], [], []>} : vector<128x256xbf16>, vector<256x128xbf16>, vector<128x128xf32> -> vector<128x128xf32>
    %c0_3 = arith.constant 0 : index
    %c0_4 = arith.constant 0 : index
    %3 = vector.load %arg2[%c0_3, %c0_4] : memref<256x128xbf16, #tpu.memory_space<vmem>>, vector<256x128xbf16>
    %cst_5 = arith.constant dense<0.000000e+00> : vector<128x128xf32>
    %4 = tpu.matmul %3, %0, %cst_5 {dimension_numbers = #tpu.dot_dimension_numbers<[0], [0], [1], [1], [0, 1, 1, 1], [], []>} : vector<256x128xbf16>, vector<256x128xbf16>, vector<128x128xf32> -> vector<128x128xf32>
    %5 = arith.truncf %2 : vector<128x128xf32> to vector<128x128xbf16>
    %c0_6 = arith.constant 0 : index
    %c0_7 = arith.constant 0 : index
    %6 = vector.load %arg4[%c0_6, %c0_7] : memref<128x128xbf16, #tpu.memory_space<vmem>>, vector<128x128xbf16>
    %cst_8 = arith.constant dense<0.000000e+00> : vector<128x128xf32>
    %7 = tpu.matmul %5, %6, %cst_8 {dimension_numbers = #tpu.dot_dimension_numbers<[1], [0], [0], [1], [0, 0, 1, 1], [], []>} : vector<128x128xbf16>, vector<128x128xbf16>, vector<128x128xf32> -> vector<128x128xf32>
    %8 = arith.truncf %4 : vector<128x128xf32> to vector<128x128xbf16>
    %c0_9 = arith.constant 0 : index
    %c0_10 = arith.constant 0 : index
    %9 = vector.load %arg5[%c0_9, %c0_10] : memref<128x128xbf16, #tpu.memory_space<vmem>>, vector<128x128xbf16>
    %cst_11 = arith.constant dense<0.000000e+00> : vector<128x128xf32>
    %10 = tpu.matmul %8, %9, %cst_11 {dimension_numbers = #tpu.dot_dimension_numbers<[1], [0], [0], [1], [0, 0, 1, 1], [], []>} : vector<128x128xbf16>, vector<128x128xbf16>, vector<128x128xf32> -> vector<128x128xf32>
    %11 = arith.addf %7, %10 : vector<128x128xf32>
    %c0_12 = arith.constant 0 : index
    %c0_13 = arith.constant 0 : index
    %12 = vector.load %arg6[%c0_12, %c0_13] : memref<1x128xf32, #tpu.memory_space<vmem>>, vector<1x128xf32>
    %13 = vector.broadcast %12 : vector<1x128xf32> to vector<128x128xf32>
    %14 = arith.addf %11, %13 : vector<128x128xf32>
    %c0_14 = arith.constant 0 : index
    %c0_15 = arith.constant 0 : index
    %15 = vector.load %arg7[%c0_14, %c0_15] : memref<128x128xf32, #tpu.memory_space<vmem>>, vector<128x128xf32>
    tpu.vector_store %arg7[%c0_14, %c0_15], %14 {strides = array<i32>} : memref<128x128xf32, #tpu.memory_space<vmem>>, vector<128x128xf32>,
    return
  }
  func.func @transform_0(%arg0: i32) -> (i32, i32) {
    %c0_i32 = arith.constant 0 : i32
    %c0_i32_0 = arith.constant 0 : i32
    return %arg0, %c0_i32 : i32, i32
  }
  func.func @transform_1(%arg0: i32) -> (i32, i32) {
    %c0_i32 = arith.constant 0 : i32
    %c0_i32_0 = arith.constant 0 : i32
    return %c0_i32, %arg0 : i32, i32
  }
  func.func @transform_2(%arg0: i32) -> (i32, i32) {
    %c0_i32 = arith.constant 0 : i32
    %c0_i32_0 = arith.constant 0 : i32
    %c0_i32_1 = arith.constant 0 : i32
    return %c0_i32, %c0_i32_0 : i32, i32
  }
  func.func @transform_3(%arg0: i32) -> (i32, i32) {
    %c0_i32 = arith.constant 0 : i32
    %c0_i32_0 = arith.constant 0 : i32
    %c0_i32_1 = arith.constant 0 : i32
    return %c0_i32, %c0_i32_0 : i32, i32
  }
  func.func @transform_4(%arg0: i32) -> (i32, i32) {
    %c0_i32 = arith.constant 0 : i32
    %c0_i32_0 = arith.constant 0 : i32
    %c0_i32_1 = arith.constant 0 : i32
    return %c0_i32, %c0_i32_0 : i32, i32
  }
  func.func @transform_5(%arg0: i32) -> (i32, i32) {
    %c0_i32 = arith.constant 0 : i32
    %c0_i32_0 = arith.constant 0 : i32
    %c0_i32_1 = arith.constant 0 : i32
    return %c0_i32, %c0_i32_0 : i32, i32
  }
  func.func @transform_6(%arg0: i32) -> (i32, i32) {
    %c0_i32 = arith.constant 0 : i32
    %c0_i32_0 = arith.constant 0 : i32
    return %arg0, %c0_i32 : i32, i32
  }
}

</mosaic_0001>

<llo_original>
// kernel: tpu_custom_call.1
$region0: #{tpu_custom_call.1}
  #allocation0 [shape = 'u32[]', space=smem, size = 0x4, offset = 0x4, fixed_abs, tag = 'smem constant byte address 0x4 - core index']
  #allocation1 [shape = 'u32[144,128]{1,0:T(1,128)}', space=vmem, size = 0x12000, scoped, tag = 'internal scratch']
  %s0 = inlined_call_operand.hbm [shape: bf16[256,256], index: 0, kind: input, shape index: {}]
  %s1 = inlined_call_operand.hbm [shape: bf16[256,256], index: 1, kind: input, shape index: {}]
  %s2 = inlined_call_operand.hbm [shape: bf16[256,128], index: 2, kind: input, shape index: {}]
  %s3 = inlined_call_operand.hbm [shape: bf16[128,128], index: 3, kind: input, shape index: {}]
  %s4 = inlined_call_operand.hbm [shape: bf16[128,128], index: 4, kind: input, shape index: {}]
  %s5 = inlined_call_operand.vmem [shape: f32[1,128], index: 5, kind: input, shape index: {}]
  %s6 = inlined_call_operand.hbm [shape: f32[256,128], index: 6, kind: output, shape index: {}]
  %s7 = sld [smem:[#allocation0]]
  $region77: #{tpu_custom_call.1} parent=0
    _
  %s9 = ssub.s32 1, %s7
  %s10 = scalar_select 0, %s9, %s7
  $region1: #{tpu_custom_call.1} parent=0
    #allocation2 [shape = 'u8[131072]{0}', space=vmem, size = 0x20000, scoped, tag = 'input window, operand 0']
    #allocation3 [shape = 's32[2]{0}', space=sflag, size = 0x8, scoped, tag = 'scoped memory for tpu_custom_call.1']
    #allocation4 [shape = 's32[2]{0}', space=sflag, size = 0x8, scoped, tag = 'scoped memory for tpu_custom_call.1']
    #allocation5 [shape = 'u8[131072]{0}', space=vmem, size = 0x20000, scoped, tag = 'input window, operand 1']
    #allocation6 [shape = 's32[2]{0}', space=sflag, size = 0x8, scoped, tag = 'scoped memory for tpu_custom_call.1']
    #allocation7 [shape = 'u8[65536]{0}', space=vmem, size = 0x10000, scoped, tag = 'input window, operand 2, single buffered']
    #allocation8 [shape = 'u8[32768]{0}', space=vmem, size = 0x8000, scoped, tag = 'input window, operand 3, single buffered']
    #allocation9 [shape = 's32[1]{0}', space=sflag, size = 0x4, scoped, tag = 'scoped memory for tpu_custom_call.1']
    #allocation10 [shape = 'u8[32768]{0}', space=vmem, size = 0x8000, scoped, tag = 'input window, operand 4, single buffered']
    #allocation11 [shape = 'u8[131072]{0}', space=vmem, size = 0x20000, scoped, tag = 'output window, operand 0']
    %11 = vsyncpa [#allocation3], 0
    %s12 = scalar_lea.sflag [#allocation3], 1
    %13 = vsyncpa %s12, 0
    %14 = vsyncpa [#allocation6], 0
    %s15 = scalar_lea.sflag [#allocation6], 1
    %16 = vsyncpa %s15, 0
    %17 = vsyncpa [#allocation9], 0
    %18 = vsyncpa [#allocation4], 0
    %s19 = scalar_lea.sflag [#allocation4], 1
    %20 = vsyncpa %s19, 0
    loop: start=0, step=1, limit=4
    $region2: #{tpu_custom_call.1} parent=1 // loop_pre_header
      _
    $region3: #{tpu_custom_call.1} parent=1 // loop_header
      %s22 = sphi 0, %s26
      %p23 = scmp.ge.s32.totalorder %s22, 4
      %s32 = sphi 0, %s34
      %s35 = sphi 0, %s32
      %s36 = sphi 0, %s35
      %s52 = sphi 0, %s36
      %s58 = sphi 0, %s60
      %s61 = sphi 0, %s58
      %s62 = sphi 0, %s61
      %s78 = sphi 0, %s62
      %s82 = sphi 0, %s82
      %s84 = sphi 0, %s82
      %s85 = sphi 0, %s84
      %s99 = sphi 0, %s85
      %s103 = sphi 0, %s103
      %s105 = sphi 0, %s103
      %s106 = sphi 0, %s105
      %s120 = sphi 0, %s106
      %s124 = sphi 0, %s124
      %s126 = sphi 0, %s124
      %s127 = sphi 0, %s126
      %s141 = sphi 0, %s127
      %s145 = sphi 0, %s145
      %s147 = sphi 0, %s145
      %s148 = sphi 0, %s147
      %s162 = sphi 0, %s148
      %s168 = sphi 0, %s170
      %s171 = sphi 0, %s168
      %s172 = sphi 0, %s171
      %s188 = sphi 0, %s172
    $region4: #{tpu_custom_call.1} parent=1 // loop_header_branch
      %25 = sbr.rel (%p23) target = $region8
    $region5: #{tpu_custom_call.1} parent=1 // loop_body
      %s27 = ssub.s32 %s22, 1
      %s28 = ssub.s32 %s22, 2
      %s29 = sadd.s32 %s22, 1
      %s30 = ssub.s32 %s22, %s29
      %p31 = scmp.eq.s32.totalorder %s30, 0
      %s33 = sadd.s32 %s32, 1
      %s34 = scalar_select %p31, %s32, %s33
      %p37 = pneg %p31
      %p38 = scmp.eq.s32.totalorder %s22, 1
      %p39 = por %p37, %p38
      %p40 = scmp.ne.s32.totalorder %s32, %s35
      %p41 = scmp.eq.s32.totalorder %s22, 0
      %p42 = por %p40, %p41
      %p43 = scmp.ne.s32.totalorder %s32, %s35
      %p44 = scmp.eq.s32.totalorder %s27, 1
      %p45 = por %p43, %p44
      %p46 = scmp.ne.s32.totalorder %s35, %s36
      %p47 = scmp.eq.s32.totalorder %s27, 0
      %p48 = por %p46, %p47
      %p49 = scmp.ne.s32.totalorder %s35, %s36
      %p50 = scmp.eq.s32.totalorder %s28, 1
      %p51 = por %p49, %p50
      %p53 = scmp.ne.s32.totalorder %s36, %s52
      %p54 = scmp.eq.s32.totalorder %s28, 0
      %p55 = por %p53, %p54
      %s56 = ssub.s32 %s22, %s29
      %p57 = scmp.eq.s32.totalorder %s56, 0
      %s59 = sadd.s32 %s58, 1
      %s60 = scalar_select %p57, %s58, %s59
      %p63 = pneg %p57
      %p64 = scmp.eq.s32.totalorder %s22, 1
      %p65 = por %p63, %p64
      %p66 = scmp.ne.s32.totalorder %s58, %s61
      %p67 = scmp.eq.s32.totalorder %s22, 0
      %p68 = por %p66, %p67
      %p69 = scmp.ne.s32.totalorder %s58, %s61
      %p70 = scmp.eq.s32.totalorder %s27, 1
      %p71 = por %p69, %p70
      %p72 = scmp.ne.s32.totalorder %s61, %s62
      %p73 = scmp.eq.s32.totalorder %s27, 0
      %p74 = por %p72, %p73
      %p75 = scmp.ne.s32.totalorder %s61, %s62
      %p76 = scmp.eq.s32.totalorder %s28, 1
      %p77 = por %p75, %p76
      %p79 = scmp.ne.s32.totalorder %s62, %s78
      %p80 = scmp.eq.s32.totalorder %s28, 0
      %p81 = por %p79, %p80
      %s83 = sadd.s32 %s82, 1
      %p86 = scmp.eq.s32.totalorder %s22, 1
      %p87 = scmp.ne.s32.totalorder %s82, %s84
      %p88 = scmp.eq.s32.totalorder %s22, 0
      %p89 = por %p87, %p88
      %p90 = scmp.ne.s32.totalorder %s82, %s84
      %p91 = scmp.eq.s32.totalorder %s27, 1
      %p92 = por %p90, %p91
      %p93 = scmp.ne.s32.totalorder %s84, %s85
      %p94 = scmp.eq.s32.totalorder %s27, 0
      %p95 = por %p93, %p94
      %p96 = scmp.ne.s32.totalorder %s84, %s85
      %p97 = scmp.eq.s32.totalorder %s28, 1
      %p98 = por %p96, %p97
      %p100 = scmp.ne.s32.totalorder %s85, %s99
      %p101 = scmp.eq.s32.totalorder %s28, 0
      %p102 = por %p100, %p101
      %s104 = sadd.s32 %s103, 1
      %p107 = scmp.eq.s32.totalorder %s22, 1
      %p108 = scmp.ne.s32.totalorder %s103, %s105
      %p109 = scmp.eq.s32.totalorder %s22, 0
      %p110 = por %p108, %p109
      %p111 = scmp.ne.s32.totalorder %s103, %s105
      %p112 = scmp.eq.s32.totalorder %s27, 1
      %p113 = por %p111, %p112
      %p114 = scmp.ne.s32.totalorder %s105, %s106
      %p115 = scmp.eq.s32.totalorder %s27, 0
      %p116 = por %p114, %p115
      %p117 = scmp.ne.s32.totalorder %s105, %s106
      %p118 = scmp.eq.s32.totalorder %s28, 1
      %p119 = por %p117, %p118
      %p121 = scmp.ne.s32.totalorder %s106, %s120
      %p122 = scmp.eq.s32.totalorder %s28, 0
      %p123 = por %p121, %p122
      %s125 = sadd.s32 %s124, 1
      %p128 = scmp.eq.s32.totalorder %s22, 1
      %p129 = scmp.ne.s32.totalorder %s124, %s126
      %p130 = scmp.eq.s32.totalorder %s22, 0
      %p131 = por %p129, %p130
      %p132 = scmp.ne.s32.totalorder %s124, %s126
      %p133 = scmp.eq.s32.totalorder %s27, 1
      %p134 = por %p132, %p133
      %p135 = scmp.ne.s32.totalorder %s126, %s127
      %p136 = scmp.eq.s32.totalorder %s27, 0
      %p137 = por %p135, %p136
      %p138 = scmp.ne.s32.totalorder %s126, %s127
      %p139 = scmp.eq.s32.totalorder %s28, 1
      %p140 = por %p138, %p139
      %p142 = scmp.ne.s32.totalorder %s127, %s141
      %p143 = scmp.eq.s32.totalorder %s28, 0
      %p144 = por %p142, %p143
      %s146 = sadd.s32 %s145, 1
      %p149 = scmp.eq.s32.totalorder %s22, 1
      %p150 = scmp.ne.s32.totalorder %s145, %s147
      %p151 = scmp.eq.s32.totalorder %s22, 0
      %p152 = por %p150, %p151
      %p153 = scmp.ne.s32.totalorder %s145, %s147
      %p154 = scmp.eq.s32.totalorder %s27, 1
      %p155 = por %p153, %p154
      %p156 = scmp.ne.s32.totalorder %s147, %s148
      %p157 = scmp.eq.s32.totalorder %s27, 0
      %p158 = por %p156, %p157
      %p159 = scmp.ne.s32.totalorder %s147, %s148
      %p160 = scmp.eq.s32.totalorder %s28, 1
      %p161 = por %p159, %p160
      %p163 = scmp.ne.s32.totalorder %s148, %s162
      %p164 = scmp.eq.s32.totalorder %s28, 0
      %p165 = por %p163, %p164
      %s166 = ssub.s32 %s22, %s29
      %p167 = scmp.eq.s32.totalorder %s166, 0
      %s169 = sadd.s32 %s168, 1
      %s170 = scalar_select %p167, %s168, %s169
      %p173 = pneg %p167
      %p174 = scmp.eq.s32.totalorder %s22, 1
      %p175 = por %p173, %p174
      %p176 = scmp.ne.s32.totalorder %s168, %s171
      %p177 = scmp.eq.s32.totalorder %s22, 0
      %p178 = por %p176, %p177
      %p179 = scmp.ne.s32.totalorder %s168, %s171
      %p180 = scmp.eq.s32.totalorder %s27, 1
      %p181 = por %p179, %p180
      %p182 = scmp.ne.s32.totalorder %s171, %s172
      %p183 = scmp.eq.s32.totalorder %s27, 0
      %p184 = por %p182, %p183
      %p185 = scmp.ne.s32.totalorder %s171, %s172
      %p186 = scmp.eq.s32.totalorder %s28, 1
      %p187 = por %p185, %p186
      %p189 = scmp.ne.s32.totalorder %s172, %s188
      %p190 = scmp.eq.s32.totalorder %s28, 0
      %p191 = por %p189, %p190
      %p192 = scmp.le.s32.totalorder 1, %s22
      %p193 = scmp.lt.s32.totalorder %s22, 3
      %p194 = pnand %p192, %p193
      %p195 = pneg %p194
      // Predicated region
      $region9: #{tpu_custom_call.1} parent=5 // pred_check
        _
      $region10: #{tpu_custom_call.1} parent=5 // pred_check_branch
        %197 = sbr.rel (%p194) target = $region12
      $region11: #{tpu_custom_call.1} parent=5 // pred_region
        %s198 = ssub.s32 %s22, 1
        // Predicated region
        $region13: #{tpu_custom_call.1} parent=11 // pred_check
          %p199 = pneg %p95
        $region14: #{tpu_custom_call.1} parent=11 // pred_check_branch
          %201 = sbr.rel (%p199) target = $region16
        $region15: #{tpu_custom_call.1} parent=11 // pred_region
          %s203 = ssub.s32 2048, 2048
          %204 = vsyncadd [#allocation6], %s203
          %s205 = sshll.u32 [#allocation7], 4
          %s206 = int_to_ptr.vmem [resolvable:$true] %s205
          %211 = dma.hbm_to_vmem [thread:$0]  %s2, 2048, %s206, [#allocation6], 64, 64, 4
        $region16: #{tpu_custom_call.1} parent=11 // pred_fallthru
          _
        // Predicated region
        $region17: #{tpu_custom_call.1} parent=11 // pred_check
          %p212 = pneg %p116
        $region18: #{tpu_custom_call.1} parent=11 // pred_check_branch
          %214 = sbr.rel (%p212) target = $region20
        $region19: #{tpu_custom_call.1} parent=11 // pred_region
          %s216 = ssub.s32 1024, 1024
          %217 = vsyncadd [#allocation9], %s216
          %s218 = sshll.u32 [#allocation8], 4
          %s219 = int_to_ptr.vmem [resolvable:$true] %s218
          %224 = dma.hbm_to_vmem [thread:$0]  %s3, 1024, %s219, [#allocation9], 64, 64, 4
        $region20: #{tpu_custom_call.1} parent=11 // pred_fallthru
          _
        // Predicated region
        $region21: #{tpu_custom_call.1} parent=11 // pred_check
          %p225 = pneg %p137
        $region22: #{tpu_custom_call.1} parent=11 // pred_check_branch
          %227 = sbr.rel (%p225) target = $region24
        $region23: #{tpu_custom_call.1} parent=11 // pred_region
          %s229 = ssub.s32 1024, 1024
          %230 = vsyncadd [#allocation9], %s229
          %s231 = sshll.u32 [#allocation10], 4
          %s232 = int_to_ptr.vmem [resolvable:$true] %s231
          %237 = dma.hbm_to_vmem [thread:$0]  %s4, 1024, %s232, [#allocation9], 64, 64, 4
        $region24: #{tpu_custom_call.1} parent=11 // pred_fallthru
          _
        // Predicated region
        $region25: #{tpu_custom_call.1} parent=11 // pred_check
          %p238 = pneg %p158
        $region26: #{tpu_custom_call.1} parent=11 // pred_check_branch
          %240 = sbr.rel (%p238) target = $region28
        $region27: #{tpu_custom_call.1} parent=11 // pred_region
          _
        $region28: #{tpu_custom_call.1} parent=11 // pred_fallthru
          _
      $region12: #{tpu_custom_call.1} parent=5 // pred_fallthru
        _
      %p241 = scmp.lt.s32.totalorder %s22, 2
      // Predicated region
      $region29: #{tpu_custom_call.1} parent=5 // pred_check
        %p242 = pneg %p241
      $region30: #{tpu_custom_call.1} parent=5 // pred_check_branch
        %244 = sbr.rel (%p242) target = $region32
      $region31: #{tpu_custom_call.1} parent=5 // pred_region
        // Predicated region
        $region33: #{tpu_custom_call.1} parent=31 // pred_check
          %p245 = pneg %p42
        $region34: #{tpu_custom_call.1} parent=31 // pred_check_branch
          %247 = sbr.rel (%p245) target = $region36
        $region35: #{tpu_custom_call.1} parent=31 // pred_region
          %s248 = sand.u32 %s32, 1
          %s249 = scalar_lea.sflag [#allocation3], %s248
          %s250 = sand.u32 %s32, 1
          %s251 = smul.addr %s250, 128
          %s252 = scalar_lea.vmem [#allocation2], %s251
          %s253 = smul.u32 16, %s22
          %s255 = ssub.s32 2048, 2048
          %256 = vsyncadd %s249, %s255
          %s257 = smul.addr %s253, 2
          %s258 = smul.addr %s257, 64
          %s259 = scalar_lea.hbm %s0, %s258
          %s260 = sshll.u32 %s252, 4
          %s261 = int_to_ptr.vmem [resolvable:$true] %s260
          %266 = dma.hbm_to_vmem [thread:$0]  %s259, 2048, %s261, %s249, 128, 128, 8
        $region36: #{tpu_custom_call.1} parent=31 // pred_fallthru
          _
        // Predicated region
        $region37: #{tpu_custom_call.1} parent=31 // pred_check
          %p267 = pneg %p68
        $region38: #{tpu_custom_call.1} parent=31 // pred_check_branch
          %269 = sbr.rel (%p267) target = $region40
        $region39: #{tpu_custom_call.1} parent=31 // pred_region
          %s270 = sand.u32 %s22, 1
          %s271 = scalar_lea.sflag [#allocation6], %s270
          %s272 = sand.u32 %s58, 1
          %s273 = smul.addr %s272, 128
          %s274 = scalar_lea.vmem [#allocation5], %s273
          %s276 = ssub.s32 2048, 2048
          %277 = vsyncadd %s271, %s276
          %s278 = smul.addr %s22, 64
          %s279 = scalar_lea.hbm %s1, %s278
          %s280 = sshll.u32 %s274, 4
          %s281 = int_to_ptr.vmem [resolvable:$true] %s280
          %286 = dma.hbm_to_vmem [thread:$0]  %s279, 2048, %s281, %s271, 128, 64, 4
        $region40: #{tpu_custom_call.1} parent=31 // pred_fallthru
          _
      $region32: #{tpu_custom_call.1} parent=5 // pred_fallthru
        _
      %p287 = scmp.le.s32.totalorder 1, %s22
      %p288 = scmp.lt.s32.totalorder %s22, 3
      %p289 = pnand %p287, %p288
      %p290 = pneg %p289
      // Predicated region
      $region41: #{tpu_custom_call.1} parent=5 // pred_check
        _
      $region42: #{tpu_custom_call.1} parent=5 // pred_check_branch
        %292 = sbr.rel (%p289) target = $region44
      $region43: #{tpu_custom_call.1} parent=5 // pred_region
        %s293 = ssub.s32 %s22, 1
        %s294 = sand.u32 %s35, 1
        %s295 = scalar_lea.sflag [#allocation3], %s294
        %s296 = sand.u32 %s35, 1
        %s297 = smul.addr %s296, 128
        %s298 = scalar_lea.vmem [#allocation2], %s297
        // Predicated region
        $region45: #{tpu_custom_call.1} parent=43 // pred_check
          %p299 = pneg %p48
        $region46: #{tpu_custom_call.1} parent=43 // pred_check_branch
          %301 = sbr.rel (%p299) target = $region48
        $region47: #{tpu_custom_call.1} parent=43 // pred_region
          %302 = dma.done %s295, 2048
        $region48: #{tpu_custom_call.1} parent=43 // pred_fallthru
          _
        %s303 = sand.u32 %s27, 1
        %s304 = scalar_lea.sflag [#allocation6], %s303
        %s305 = sand.u32 %s61, 1
        %s306 = smul.addr %s305, 128
        %s307 = scalar_lea.vmem [#allocation5], %s306
        // Predicated region
        $region49: #{tpu_custom_call.1} parent=43 // pred_check
          %p308 = pneg %p74
        $region50: #{tpu_custom_call.1} parent=43 // pred_check_branch
          %310 = sbr.rel (%p308) target = $region52
        $region51: #{tpu_custom_call.1} parent=43 // pred_region
          %311 = dma.done %s304, 2048
        $region52: #{tpu_custom_call.1} parent=43 // pred_fallthru
          _
        // Predicated region
        $region53: #{tpu_custom_call.1} parent=43 // pred_check
          %p312 = pneg %p95
        $region54: #{tpu_custom_call.1} parent=43 // pred_check_branch
          %314 = sbr.rel (%p312) target = $region56
        $region55: #{tpu_custom_call.1} parent=43 // pred_region
          %315 = dma.done [#allocation6], 2048
        $region56: #{tpu_custom_call.1} parent=43 // pred_fallthru
          _
        // Predicated region
        $region57: #{tpu_custom_call.1} parent=43 // pred_check
          %p316 = pneg %p116
        $region58: #{tpu_custom_call.1} parent=43 // pred_check_branch
          %318 = sbr.rel (%p316) target = $region60
        $region59: #{tpu_custom_call.1} parent=43 // pred_region
          %319 = dma.done [#allocation9], 1024
        $region60: #{tpu_custom_call.1} parent=43 // pred_fallthru
          _
        // Predicated region
        $region61: #{tpu_custom_call.1} parent=43 // pred_check
          %p320 = pneg %p137
        $region62: #{tpu_custom_call.1} parent=43 // pred_check_branch
          %322 = sbr.rel (%p320) target = $region64
        $region63: #{tpu_custom_call.1} parent=43 // pred_region
          %323 = dma.done [#allocation9], 1024
        $region64: #{tpu_custom_call.1} parent=43 // pred_fallthru
          _
        %s324 = sand.u32 %s35, 1
        %s325 = scalar_lea.sflag [#allocation3], %s324
        %s326 = sand.u32 %s35, 1
        %s327 = smul.addr %s326, 128
        %s328 = scalar_lea.vmem [#allocation2], %s327
        %p329 = pneg %p48
        %p330 = pneg %p45
        %s331 = sand.u32 %s27, 1
        %s332 = scalar_lea.sflag [#allocation6], %s331
        %s333 = sand.u32 %s61, 1
        %s334 = smul.addr %s333, 128
        %s335 = scalar_lea.vmem [#allocation5], %s334
        %p336 = pneg %p74
        %p337 = pneg %p71
        %p338 = pneg %p95
        %p339 = pneg %p92
        %p340 = pneg %p116
        %p341 = pneg %p113
        %p342 = pneg %p137
        %p343 = pneg %p134
        %p344 = pneg %p158
        %p345 = pneg %p155
        %p346 = pneg %p184
        %p347 = pneg %p181
        %s348 = sand.u32 %s171, 1
        %s349 = scalar_lea.sflag [#allocation4], %s348
        %s350 = sand.u32 %s171, 1
        %s351 = smul.addr %s350, 128
        %s352 = scalar_lea.vmem [#allocation11], %s351
        %s353 = smul.u32 16, %s27
        %s354 = smul.u32 16, %s27
        %v356 = vld [vmem:[#allocation7] sm:$0xf]
        %v357 = vld [vmem:[#allocation7 + $0x4] sm:$0xf]
        %v358 = vld [vmem:[#allocation7 + $0x8] sm:$0xf]
        %v359 = vld [vmem:[#allocation7 + $0xc] sm:$0xf]
        %v360 = vld [vmem:[#allocation7 + $0x10] sm:$0xf]
        %v361 = vld [vmem:[#allocation7 + $0x14] sm:$0xf]
        %v362 = vld [vmem:[#allocation7 + $0x18] sm:$0xf]
        %v363 = vld [vmem:[#allocation7 + $0x1c] sm:$0xf]
        %v364 = vld [vmem:[#allocation7 + $0x20] sm:$0xf]
        %v365 = vld [vmem:[#allocation7 + $0x24] sm:$0xf]
        %v366 = vld [vmem:[#allocation7 + $0x28] sm:$0xf]
        %v367 = vld [vmem:[#allocation7 + $0x2c] sm:$0xf]
        %v368 = vld [vmem:[#allocation7 + $0x30] sm:$0xf]
        %v369 = vld [vmem:[#allocation7 + $0x34] sm:$0xf]
        %v370 = vld [vmem:[#allocation7 + $0x38] sm:$0xf]
        %v371 = vld [vmem:[#allocation7 + $0x3c] sm:$0xf]
        %v372 = vld [vmem:[#allocation7 + $0x40] sm:$0xf]
        %v373 = vld [vmem:[#allocation7 + $0x44] sm:$0xf]
        %v374 = vld [vmem:[#allocation7 + $0x48] sm:$0xf]
        %v375 = vld [vmem:[#allocation7 + $0x4c] sm:$0xf]
        %v376 = vld [vmem:[#allocation7 + $0x50] sm:$0xf]
        %v377 = vld [vmem:[#allocation7 + $0x54] sm:$0xf]
        %v378 = vld [vmem:[#allocation7 + $0x58] sm:$0xf]
        %v379 = vld [vmem:[#allocation7 + $0x5c] sm:$0xf]
        %v380 = vld [vmem:[#allocation7 + $0x60] sm:$0xf]
        %v381 = vld [vmem:[#allocation7 + $0x64] sm:$0xf]
        %v382 = vld [vmem:[#allocation7 + $0x68] sm:$0xf]
        %v383 = vld [vmem:[#allocation7 + $0x6c] sm:$0xf]
        %v384 = vld [vmem:[#allocation7 + $0x70] sm:$0xf]
        %v385 = vld [vmem:[#allocation7 + $0x74] sm:$0xf]
        %v386 = vld [vmem:[#allocation7 + $0x78] sm:$0xf]
        %v387 = vld [vmem:[#allocation7 + $0x7c] sm:$0xf]
        %v388 = vld [vmem:[%s298] sm:$0xff]
        %v389 = vld [vmem:[%s298 + $0x8] sm:$0xff]
        %v390 = vld [vmem:[%s298 + $0x10] sm:$0xff]
        %v391 = vld [vmem:[%s298 + $0x18] sm:$0xff]
        %v392 = vld [vmem:[%s298 + $0x20] sm:$0xff]
        %v393 = vld [vmem:[%s298 + $0x28] sm:$0xff]
        %v394 = vld [vmem:[%s298 + $0x30] sm:$0xff]
        %v395 = vld [vmem:[%s298 + $0x38] sm:$0xff]
        %v396 = vld [vmem:[%s298 + $0x40] sm:$0xff]
        %v397 = vld [vmem:[%s298 + $0x48] sm:$0xff]
        %v398 = vld [vmem:[%s298 + $0x50] sm:$0xff]
        %v399 = vld [vmem:[%s298 + $0x58] sm:$0xff]
        %v400 = vld [vmem:[%s298 + $0x60] sm:$0xff]
        %v401 = vld [vmem:[%s298 + $0x68] sm:$0xff]
        %v402 = vld [vmem:[%s298 + $0x70] sm:$0xff]
        %v403 = vld [vmem:[%s298 + $0x78] sm:$0xff]
        %v420 = vunpack.c.l.b16 %v388
        %v421 = vunpack.c.h.b16 %v388
        %v422 = vunpack.c.l.b16 %v389
        %v423 = vunpack.c.h.b16 %v389
        %v424 = vunpack.c.l.b16 %v390
        %v425 = vunpack.c.h.b16 %v390
        %v426 = vunpack.c.l.b16 %v391
        %v427 = vunpack.c.h.b16 %v391
        %v428 = vunpack.c.l.b16 %v392
        %v429 = vunpack.c.h.b16 %v392
        %v430 = vunpack.c.l.b16 %v393
        %v431 = vunpack.c.h.b16 %v393
        %v432 = vunpack.c.l.b16 %v394
        %v433 = vunpack.c.h.b16 %v394
        %v434 = vunpack.c.l.b16 %v395
        %v435 = vunpack.c.h.b16 %v395
        %v436 = vunpack.c.l.b16 %v396
        %v437 = vunpack.c.h.b16 %v396
        %v438 = vunpack.c.l.b16 %v397
        %v439 = vunpack.c.h.b16 %v397
        %v440 = vunpack.c.l.b16 %v398
        %v441 = vunpack.c.h.b16 %v398
        %v442 = vunpack.c.l.b16 %v399
        %v443 = vunpack.c.h.b16 %v399
        %v444 = vunpack.c.l.b16 %v400
        %v445 = vunpack.c.h.b16 %v400
        %v446 = vunpack.c.l.b16 %v401
        %v447 = vunpack.c.h.b16 %v401
        %v448 = vunpack.c.l.b16 %v402
        %v449 = vunpack.c.h.b16 %v402
        %v450 = vunpack.c.l.b16 %v403
        %v451 = vunpack.c.h.b16 %v403
        %v452 = vpack.c.b16 %v422, %v420
        %v453 = vpack.c.b16 %v423, %v421
        %v454 = vpack.c.b16 %v426, %v424
        %v455 = vpack.c.b16 %v427, %v425
        %v456 = vpack.c.b16 %v430, %v428
        %v457 = vpack.c.b16 %v431, %v429
        %v458 = vpack.c.b16 %v434, %v432
        %v459 = vpack.c.b16 %v435, %v433
        %v460 = vpack.c.b16 %v438, %v436
        %v461 = vpack.c.b16 %v439, %v437
        %v462 = vpack.c.b16 %v442, %v440
        %v463 = vpack.c.b16 %v443, %v441
        %v464 = vpack.c.b16 %v446, %v444
        %v465 = vpack.c.b16 %v447, %v445
        %v466 = vpack.c.b16 %v450, %v448
        %v467 = vpack.c.b16 %v451, %v449
        %v516 = vunpack.c.l.b16 %v356
        %v517 = vunpack.c.l.b16 %v357
        %v518 = vunpack.c.l.b16 %v358
        %v519 = vunpack.c.l.b16 %v359
        %v520 = vunpack.c.l.b16 %v360
        %v521 = vunpack.c.l.b16 %v361
        %v522 = vunpack.c.l.b16 %v362
        %v523 = vunpack.c.l.b16 %v363
        %v524 = vunpack.c.l.b16 %v364
        %v525 = vunpack.c.l.b16 %v365
        %v526 = vunpack.c.l.b16 %v366
        %v527 = vunpack.c.l.b16 %v367
        %v528 = vunpack.c.l.b16 %v368
        %v529 = vunpack.c.l.b16 %v369
        %v530 = vunpack.c.l.b16 %v370
        %v531 = vunpack.c.l.b16 %v371
        %v532 = vunpack.c.l.b16 %v372
        %v533 = vunpack.c.l.b16 %v373
        %v534 = vunpack.c.l.b16 %v374
        %v535 = vunpack.c.l.b16 %v375
        %v536 = vunpack.c.l.b16 %v376
        %v537 = vunpack.c.l.b16 %v377
        %v538 = vunpack.c.l.b16 %v378
        %v539 = vunpack.c.l.b16 %v379
        %v540 = vunpack.c.l.b16 %v380
        %v541 = vunpack.c.l.b16 %v381
        %v542 = vunpack.c.l.b16 %v382
        %v543 = vunpack.c.l.b16 %v383
        %v544 = vunpack.c.l.b16 %v384
        %v545 = vunpack.c.l.b16 %v385
        %v546 = vunpack.c.l.b16 %v386
        %v547 = vunpack.c.l.b16 %v387
        %v548 = vpack.c.b16 %v517, %v516
        %v549 = vpack.c.b16 %v519, %v518
        %v550 = vpack.c.b16 %v521, %v520
        %v551 = vpack.c.b16 %v523, %v522
        %v552 = vpack.c.b16 %v525, %v524
        %v553 = vpack.c.b16 %v527, %v526
        %v554 = vpack.c.b16 %v529, %v528
        %v555 = vpack.c.b16 %v531, %v530
        %v556 = vpack.c.b16 %v533, %v532
        %v557 = vpack.c.b16 %v535, %v534
        %v558 = vpack.c.b16 %v537, %v536
        %v559 = vpack.c.b16 %v539, %v538
        %v560 = vpack.c.b16 %v541, %v540
        %v561 = vpack.c.b16 %v543, %v542
        %v562 = vpack.c.b16 %v545, %v544
        %v563 = vpack.c.b16 %v547, %v546
        %580 = vmatprep.subr.bf16.mxu0 0
        %581 = vmatpush1.bf16.msra.mxu0 %v548
        %582 = vmatprep.subr.bf16.mxu0 0
        %583 = vmatpush1.bf16.msra.mxu0 %v549
        %584 = vmatprep.subr.bf16.mxu0 0
        %585 = vmatpush1.bf16.msra.mxu0 %v550
        %586 = vmatprep.subr.bf16.mxu0 0
        %587 = vmatpush1.bf16.msra.mxu0 %v551
        %588 = vmatprep.subr.bf16.mxu0 0
        %589 = vmatpush1.bf16.msra.mxu0 %v552
        %590 = vmatprep.subr.bf16.mxu0 0
        %591 = vmatpush1.bf16.msra.mxu0 %v553
        %592 = vmatprep.subr.bf16.mxu0 0
        %593 = vmatpush1.bf16.msra.mxu0 %v554
        %594 = vmatprep.subr.bf16.mxu0 0
        %595 = vmatpush1.bf16.msra.mxu0 %v555
        %596 = vmatprep.subr.bf16.mxu0 0
        %597 = vmatpush1.bf16.msra.mxu0 %v556
        %598 = vmatprep.subr.bf16.mxu0 0
        %599 = vmatpush1.bf16.msra.mxu0 %v557
        %600 = vmatprep.subr.bf16.mxu0 0
        %601 = vmatpush1.bf16.msra.mxu0 %v558
        %602 = vmatprep.subr.bf16.mxu0 0
        %603 = vmatpush1.bf16.msra.mxu0 %v559
        %604 = vmatprep.subr.bf16.mxu0 0
        %605 = vmatpush1.bf16.msra.mxu0 %v560
        %606 = vmatprep.subr.bf16.mxu0 0
        %607 = vmatpush1.bf16.msra.mxu0 %v561
        %608 = vmatprep.subr.bf16.mxu0 0
        %609 = vmatpush1.bf16.msra.mxu0 %v562
        %610 = vmatprep.subr.bf16.mxu0 0
        %611 = vmatpush1.bf16.msra.mxu0 %v563
        %612 = vmatprep.mubr.bf16.mxu0 %v453
        %613 = vmatmul.mubr.bf16.gmra.mrb[0].mxu0 %v452
        %v614 = vpop.f32.mrb[0].mxu0
        %v615 = vadd.f32 0.0, %v614
        %v616 = vpop.f32.mrb[0].mxu0
        %v617 = vpop.f32.mrb[0].mxu0
        %v618 = vadd.f32 0.0, %v617
        %v619 = vpop.f32.mrb[0].mxu0
        %620 = vmatprep.mubr.bf16.mxu0 %v455
        %621 = vmatmul.mubr.bf16.gmra.mrb[0].mxu0 %v454
        %v622 = vpop.f32.mrb[0].mxu0
        %v623 = vadd.f32 0.0, %v622
        %v624 = vpop.f32.mrb[0].mxu0
        %v625 = vpop.f32.mrb[0].mxu0
        %v626 = vadd.f32 0.0, %v625
        %v627 = vpop.f32.mrb[0].mxu0
        %628 = vmatprep.mubr.bf16.mxu0 %v457
        %629 = vmatmul.mubr.bf16.gmra.mrb[0].mxu0 %v456
        %v630 = vpop.f32.mrb[0].mxu0
        %v631 = vadd.f32 0.0, %v630
        %v632 = vpop.f32.mrb[0].mxu0
        %v633 = vpop.f32.mrb[0].mxu0
        %v634 = vadd.f32 0.0, %v633
        %v635 = vpop.f32.mrb[0].mxu0
        %636 = vmatprep.mubr.bf16.mxu0 %v459
        %637 = vmatmul.mubr.bf16.gmra.mrb[0].mxu0 %v458
        %v638 = vpop.f32.mrb[0].mxu0
        %v639 = vadd.f32 0.0, %v638
        %v640 = vpop.f32.mrb[0].mxu0
        %v641 = vpop.f32.mrb[0].mxu0
        %v642 = vadd.f32 0.0, %v641
        %v643 = vpop.f32.mrb[0].mxu0
        %644 = vmatprep.mubr.bf16.mxu0 %v461
        %645 = vmatmul.mubr.bf16.gmra.mrb[0].mxu0 %v460
        %v646 = vpop.f32.mrb[0].mxu0
        %v647 = vadd.f32 0.0, %v646
        %v648 = vpop.f32.mrb[0].mxu0
        %v649 = vpop.f32.mrb[0].mxu0
        %v650 = vadd.f32 0.0, %v649
        %v651 = vpop.f32.mrb[0].mxu0
        %652 = vmatprep.mubr.bf16.mxu0 %v463
        %653 = vmatmul.mubr.bf16.gmra.mrb[0].mxu0 %v462
        %v654 = vpop.f32.mrb[0].mxu0
        %v655 = vadd.f32 0.0, %v654
        %v656 = vpop.f32.mrb[0].mxu0
        %v657 = vpop.f32.mrb[0].mxu0
        %v658 = vadd.f32 0.0, %v657
        %v659 = vpop.f32.mrb[0].mxu0
        %660 = vmatprep.mubr.bf16.mxu0 %v465
        %661 = vmatmul.mubr.bf16.gmra.mrb[0].mxu0 %v464
        %v662 = vpop.f32.mrb[0].mxu0
        %v663 = vadd.f32 0.0, %v662
        %v664 = vpop.f32.mrb[0].mxu0
        %v665 = vpop.f32.mrb[0].mxu0
        %v666 = vadd.f32 0.0, %v665
        %v667 = vpop.f32.mrb[0].mxu0
        %668 = vmatprep.mubr.bf16.mxu0 %v467
        %669 = vmatmul.mubr.bf16.gmra.mrb[0].mxu0 %v466
        %v670 = vpop.f32.mrb[0].mxu0
        %v671 = vadd.f32 0.0, %v670
        %v672 = vpop.f32.mrb[0].mxu0
        %v673 = vpop.f32.mrb[0].mxu0
        %v674 = vadd.f32 0.0, %v673
        %v675 = vpop.f32.mrb[0].mxu0
        %676 = vdwg.mxu0
        %v677 = vld [vmem:[%s307] sm:$0xf]
        %v678 = vld [vmem:[%s307 + $0x4] sm:$0xf]
        %v679 = vld [vmem:[%s307 + $0x8] sm:$0xf]
        %v680 = vld [vmem:[%s307 + $0xc] sm:$0xf]
        %v681 = vld [vmem:[%s307 + $0x10] sm:$0xf]
        %v682 = vld [vmem:[%s307 + $0x14] sm:$0xf]
        %v683 = vld [vmem:[%s307 + $0x18] sm:$0xf]
        %v684 = vld [vmem:[%s307 + $0x1c] sm:$0xf]
        %v685 = vld [vmem:[%s307 + $0x20] sm:$0xf]
        %v686 = vld [vmem:[%s307 + $0x24] sm:$0xf]
        %v687 = vld [vmem:[%s307 + $0x28] sm:$0xf]
        %v688 = vld [vmem:[%s307 + $0x2c] sm:$0xf]
        %v689 = vld [vmem:[%s307 + $0x30] sm:$0xf]
        %v690 = vld [vmem:[%s307 + $0x34] sm:$0xf]
        %v691 = vld [vmem:[%s307 + $0x38] sm:$0xf]
        %v692 = vld [vmem:[%s307 + $0x3c] sm:$0xf]
        %v693 = vld [vmem:[%s307 + $0x40] sm:$0xf]
        %v694 = vld [vmem:[%s307 + $0x44] sm:$0xf]
        %v695 = vld [vmem:[%s307 + $0x48] sm:$0xf]
        %v696 = vld [vmem:[%s307 + $0x4c] sm:$0xf]
        %v697 = vld [vmem:[%s307 + $0x50] sm:$0xf]
        %v698 = vld [vmem:[%s307 + $0x54] sm:$0xf]
        %v699 = vld [vmem:[%s307 + $0x58] sm:$0xf]
        %v700 = vld [vmem:[%s307 + $0x5c] sm:$0xf]
        %v701 = vld [vmem:[%s307 + $0x60] sm:$0xf]
        %v702 = vld [vmem:[%s307 + $0x64] sm:$0xf]
        %v703 = vld [vmem:[%s307 + $0x68] sm:$0xf]
        %v704 = vld [vmem:[%s307 + $0x6c] sm:$0xf]
        %v705 = vld [vmem:[%s307 + $0x70] sm:$0xf]
        %v706 = vld [vmem:[%s307 + $0x74] sm:$0xf]
        %v707 = vld [vmem:[%s307 + $0x78] sm:$0xf]
        %v708 = vld [vmem:[%s307 + $0x7c] sm:$0xf]
        %v741 = vunpack.c.l.b16 %v677
        %v742 = vunpack.c.l.b16 %v678
        %v743 = vunpack.c.l.b16 %v679
        %v744 = vunpack.c.l.b16 %v680
        %v745 = vunpack.c.l.b16 %v681
        %v746 = vunpack.c.l.b16 %v682
        %v747 = vunpack.c.l.b16 %v683
        %v748 = vunpack.c.l.b16 %v684
        %v749 = vunpack.c.l.b16 %v685
        %v750 = vunpack.c.l.b16 %v686
        %v751 = vunpack.c.l.b16 %v687
        %v752 = vunpack.c.l.b16 %v688
        %v753 = vunpack.c.l.b16 %v689
        %v754 = vunpack.c.l.b16 %v690
        %v755 = vunpack.c.l.b16 %v691
        %v756 = vunpack.c.l.b16 %v692
        %v757 = vunpack.c.l.b16 %v693
        %v758 = vunpack.c.l.b16 %v694
        %v759 = vunpack.c.l.b16 %v695
        %v760 = vunpack.c.l.b16 %v696
        %v761 = vunpack.c.l.b16 %v697
        %v762 = vunpack.c.l.b16 %v698
        %v763 = vunpack.c.l.b16 %v699
        %v764 = vunpack.c.l.b16 %v700
        %v765 = vunpack.c.l.b16 %v701
        %v766 = vunpack.c.l.b16 %v702
        %v767 = vunpack.c.l.b16 %v703
        %v768 = vunpack.c.l.b16 %v704
        %v769 = vunpack.c.l.b16 %v705
        %v770 = vunpack.c.l.b16 %v706
        %v771 = vunpack.c.l.b16 %v707
        %v772 = vunpack.c.l.b16 %v708
        %v773 = vpack.c.b16 %v742, %v741
        %v774 = vpack.c.b16 %v744, %v743
        %v775 = vpack.c.b16 %v746, %v745
        %v776 = vpack.c.b16 %v748, %v747
        %v777 = vpack.c.b16 %v750, %v749
        %v778 = vpack.c.b16 %v752, %v751
        %v779 = vpack.c.b16 %v754, %v753
        %v780 = vpack.c.b16 %v756, %v755
        %v781 = vpack.c.b16 %v758, %v757
        %v782 = vpack.c.b16 %v760, %v759
        %v783 = vpack.c.b16 %v762, %v761
        %v784 = vpack.c.b16 %v764, %v763
        %v785 = vpack.c.b16 %v766, %v765
        %v786 = vpack.c.b16 %v768, %v767
        %v787 = vpack.c.b16 %v770, %v769
        %v788 = vpack.c.b16 %v772, %v771
        %805 = vxpose.xlu0.c.b16.start [1/8] %v773, 128
        %806 = vxpose.xlu0.c.b16.cont [2/8] %v774, 128
        %807 = vxpose.xlu0.c.b16.cont [3/8] %v775, 128
        %808 = vxpose.xlu0.c.b16.cont [4/8] %v776, 128
        %809 = vxpose.xlu0.c.b16.cont [5/8] %v777, 128
        %810 = vxpose.xlu0.c.b16.cont [6/8] %v778, 128
        %811 = vxpose.xlu0.c.b16.cont [7/8] %v779, 128
        %812 = vxpose.xlu0.c.b16.end [8/8] %v780, 128
        %v813 = vpop.trf.xlu0
        %v814 = vpop.trf.xlu0
        %v815 = vpop.trf.xlu0
        %v816 = vpop.trf.xlu0
        %v817 = vpop.trf.xlu0
        %v818 = vpop.trf.xlu0
        %v819 = vpop.trf.xlu0
        %v820 = vpop.trf.xlu0
        %821 = vxpose.xlu0.c.b16.start [1/8] %v781, 128
        %822 = vxpose.xlu0.c.b16.cont [2/8] %v782, 128
        %823 = vxpose.xlu0.c.b16.cont [3/8] %v783, 128
        %824 = vxpose.xlu0.c.b16.cont [4/8] %v784, 128
        %825 = vxpose.xlu0.c.b16.cont [5/8] %v785, 128
        %826 = vxpose.xlu0.c.b16.cont [6/8] %v786, 128
        %827 = vxpose.xlu0.c.b16.cont [7/8] %v787, 128
        %828 = vxpose.xlu0.c.b16.end [8/8] %v788, 128
        %v829 = vpop.trf.xlu0
        %v830 = vpop.trf.xlu0
        %v831 = vpop.trf.xlu0
        %v832 = vpop.trf.xlu0
        %v833 = vpop.trf.xlu0
        %v834 = vpop.trf.xlu0
        %v835 = vpop.trf.xlu0
        %v836 = vpop.trf.xlu0
        %837 = vmatprep.subr.bf16.mxu0 0
        %838 = vmatpush1.bf16.msra.mxu0 %v548
        %839 = vmatprep.subr.bf16.mxu0 0
        %840 = vmatpush1.bf16.msra.mxu0 %v549
        %841 = vmatprep.subr.bf16.mxu0 0
        %842 = vmatpush1.bf16.msra.mxu0 %v550
        %843 = vmatprep.subr.bf16.mxu0 0
        %844 = vmatpush1.bf16.msra.mxu0 %v551
        %845 = vmatprep.subr.bf16.mxu0 0
        %846 = vmatpush1.bf16.msra.mxu0 %v552
        %847 = vmatprep.subr.bf16.mxu0 0
        %848 = vmatpush1.bf16.msra.mxu0 %v553
        %849 = vmatprep.subr.bf16.mxu0 0
        %850 = vmatpush1.bf16.msra.mxu0 %v554
        %851 = vmatprep.subr.bf16.mxu0 0
        %852 = vmatpush1.bf16.msra.mxu0 %v555
        %853 = vmatprep.subr.bf16.mxu0 0
        %854 = vmatpush1.bf16.msra.mxu0 %v556
        %855 = vmatprep.subr.bf16.mxu0 0
        %856 = vmatpush1.bf16.msra.mxu0 %v557
        %857 = vmatprep.subr.bf16.mxu0 0
        %858 = vmatpush1.bf16.msra.mxu0 %v558
        %859 = vmatprep.subr.bf16.mxu0 0
        %860 = vmatpush1.bf16.msra.mxu0 %v559
        %861 = vmatprep.subr.bf16.mxu0 0
        %862 = vmatpush1.bf16.msra.mxu0 %v560
        %863 = vmatprep.subr.bf16.mxu0 0
        %864 = vmatpush1.bf16.msra.mxu0 %v561
        %865 = vmatprep.subr.bf16.mxu0 0
        %866 = vmatpush1.bf16.msra.mxu0 %v562
        %867 = vmatprep.subr.bf16.mxu0 0
        %868 = vmatpush1.bf16.msra.mxu0 %v563
        %869 = vmatprep.mubr.bf16.mxu0 %v829
        %870 = vmatmul.mubr.bf16.gmra.mrb[0].mxu0 %v813
        %v871 = vpop.f32.mrb[0].mxu0
        %v872 = vadd.f32 0.0, %v871
        %v873 = vpop.f32.mrb[0].mxu0
        %v874 = vpop.f32.mrb[0].mxu0
        %v875 = vadd.f32 0.0, %v874
        %v876 = vpop.f32.mrb[0].mxu0
        %877 = vmatprep.mubr.bf16.mxu0 %v830
        %878 = vmatmul.mubr.bf16.gmra.mrb[0].mxu0 %v814
        %v879 = vpop.f32.mrb[0].mxu0
        %v880 = vadd.f32 0.0, %v879
        %v881 = vpop.f32.mrb[0].mxu0
        %v882 = vpop.f32.mrb[0].mxu0
        %v883 = vadd.f32 0.0, %v882
        %v884 = vpop.f32.mrb[0].mxu0
        %885 = vmatprep.mubr.bf16.mxu0 %v831
        %886 = vmatmul.mubr.bf16.gmra.mrb[0].mxu0 %v815
        %v887 = vpop.f32.mrb[0].mxu0
        %v888 = vadd.f32 0.0, %v887
        %v889 = vpop.f32.mrb[0].mxu0
        %v890 = vpop.f32.mrb[0].mxu0
        %v891 = vadd.f32 0.0, %v890
        %v892 = vpop.f32.mrb[0].mxu0
        %893 = vmatprep.mubr.bf16.mxu0 %v832
        %894 = vmatmul.mubr.bf16.gmra.mrb[0].mxu0 %v816
        %v895 = vpop.f32.mrb[0].mxu0
        %v896 = vadd.f32 0.0, %v895
        %v897 = vpop.f32.mrb[0].mxu0
        %v898 = vpop.f32.mrb[0].mxu0
        %v899 = vadd.f32 0.0, %v898
        %v900 = vpop.f32.mrb[0].mxu0
        %901 = vmatprep.mubr.bf16.mxu0 %v833
        %902 = vmatmul.mubr.bf16.gmra.mrb[0].mxu0 %v817
        %v903 = vpop.f32.mrb[0].mxu0
        %v904 = vadd.f32 0.0, %v903
        %v905 = vpop.f32.mrb[0].mxu0
        %v906 = vpop.f32.mrb[0].mxu0
        %v907 = vadd.f32 0.0, %v906
        %v908 = vpop.f32.mrb[0].mxu0
        %909 = vmatprep.mubr.bf16.mxu0 %v834
        %910 = vmatmul.mubr.bf16.gmra.mrb[0].mxu0 %v818
        %v911 = vpop.f32.mrb[0].mxu0
        %v912 = vadd.f32 0.0, %v911
        %v913 = vpop.f32.mrb[0].mxu0
        %v914 = vpop.f32.mrb[0].mxu0
        %v915 = vadd.f32 0.0, %v914
        %v916 = vpop.f32.mrb[0].mxu0
        %917 = vmatprep.mubr.bf16.mxu0 %v835
        %918 = vmatmul.mubr.bf16.gmra.mrb[0].mxu0 %v819
        %v919 = vpop.f32.mrb[0].mxu0
        %v920 = vadd.f32 0.0, %v919
        %v921 = vpop.f32.mrb[0].mxu0
        %v922 = vpop.f32.mrb[0].mxu0
        %v923 = vadd.f32 0.0, %v922
        %v924 = vpop.f32.mrb[0].mxu0
        %925 = vmatprep.mubr.bf16.mxu0 %v836
        %926 = vmatmul.mubr.bf16.gmra.mrb[0].mxu0 %v820
        %v927 = vpop.f32.mrb[0].mxu0
        %v928 = vadd.f32 0.0, %v927
        %v929 = vpop.f32.mrb[0].mxu0
        %v930 = vpop.f32.mrb[0].mxu0
        %v931 = vadd.f32 0.0, %v930
        %v932 = vpop.f32.mrb[0].mxu0
        %933 = vdwg.mxu0
        %v934 = vpack.c.bf16 %v618, %v615
        %v935 = vpack.c.bf16 %v626, %v623
        %v936 = vpack.c.bf16 %v634, %v631
        %v937 = vpack.c.bf16 %v642, %v639
        %v938 = vpack.c.bf16 %v650, %v647
        %v939 = vpack.c.bf16 %v658, %v655
        %v940 = vpack.c.bf16 %v666, %v663
        %v941 = vpack.c.bf16 %v674, %v671
        %v942 = vld [vmem:[#allocation8] sm:$0xf]
        %v943 = vld [vmem:[#allocation8 + $0x4] sm:$0xf]
        %v944 = vld [vmem:[#allocation8 + $0x8] sm:$0xf]
        %v945 = vld [vmem:[#allocation8 + $0xc] sm:$0xf]
        %v946 = vld [vmem:[#allocation8 + $0x10] sm:$0xf]
        %v947 = vld [vmem:[#allocation8 + $0x14] sm:$0xf]
        %v948 = vld [vmem:[#allocation8 + $0x18] sm:$0xf]
        %v949 = vld [vmem:[#allocation8 + $0x1c] sm:$0xf]
        %v950 = vld [vmem:[#allocation8 + $0x20] sm:$0xf]
        %v951 = vld [vmem:[#allocation8 + $0x24] sm:$0xf]
        %v952 = vld [vmem:[#allocation8 + $0x28] sm:$0xf]
        %v953 = vld [vmem:[#allocation8 + $0x2c] sm:$0xf]
        %v954 = vld [vmem:[#allocation8 + $0x30] sm:$0xf]
        %v955 = vld [vmem:[#allocation8 + $0x34] sm:$0xf]
        %v956 = vld [vmem:[#allocation8 + $0x38] sm:$0xf]
        %v957 = vld [vmem:[#allocation8 + $0x3c] sm:$0xf]
        %v958 = vpack.c.bf16 %v875, %v872
        %v959 = vpack.c.bf16 %v883, %v880
        %v960 = vpack.c.bf16 %v891, %v888
        %v961 = vpack.c.bf16 %v899, %v896
        %v962 = vpack.c.bf16 %v907, %v904
        %v963 = vpack.c.bf16 %v915, %v912
        %v964 = vpack.c.bf16 %v923, %v920
        %v965 = vpack.c.bf16 %v931, %v928
        %v966 = vld [vmem:[#allocation10] sm:$0xf]
        %v967 = vld [vmem:[#allocation10 + $0x4] sm:$0xf]
        %v968 = vld [vmem:[#allocation10 + $0x8] sm:$0xf]
        %v969 = vld [vmem:[#allocation10 + $0xc] sm:$0xf]
        %v970 = vld [vmem:[#allocation10 + $0x10] sm:$0xf]
        %v971 = vld [vmem:[#allocation10 + $0x14] sm:$0xf]
        %v972 = vld [vmem:[#allocation10 + $0x18] sm:$0xf]
        %v973 = vld [vmem:[#allocation10 + $0x1c] sm:$0xf]
        %v974 = vld [vmem:[#allocation10 + $0x20] sm:$0xf]
        %v975 = vld [vmem:[#allocation10 + $0x24] sm:$0xf]
        %v976 = vld [vmem:[#allocation10 + $0x28] sm:$0xf]
        %v977 = vld [vmem:[#allocation10 + $0x2c] sm:$0xf]
        %v978 = vld [vmem:[#allocation10 + $0x30] sm:$0xf]
        %v979 = vld [vmem:[#allocation10 + $0x34] sm:$0xf]
        %v980 = vld [vmem:[#allocation10 + $0x38] sm:$0xf]
        %v981 = vld [vmem:[#allocation10 + $0x3c] sm:$0xf]
        %v998 = vunpack.c.l.b16 %v966
        %v999 = vunpack.c.l.b16 %v967
        %v1000 = vunpack.c.l.b16 %v968
        %v1001 = vunpack.c.l.b16 %v969
        %v1002 = vunpack.c.l.b16 %v970
        %v1003 = vunpack.c.l.b16 %v971
        %v1004 = vunpack.c.l.b16 %v972
        %v1005 = vunpack.c.l.b16 %v973
        %v1006 = vunpack.c.l.b16 %v974
        %v1007 = vunpack.c.l.b16 %v975
        %v1008 = vunpack.c.l.b16 %v976
        %v1009 = vunpack.c.l.b16 %v977
        %v1010 = vunpack.c.l.b16 %v978
        %v1011 = vunpack.c.l.b16 %v979
        %v1012 = vunpack.c.l.b16 %v980
        %v1013 = vunpack.c.l.b16 %v981
        %v1014 = vpack.c.b16 %v999, %v998
        %v1015 = vpack.c.b16 %v1001, %v1000
        %v1016 = vpack.c.b16 %v1003, %v1002
        %v1017 = vpack.c.b16 %v1005, %v1004
        %v1018 = vpack.c.b16 %v1007, %v1006
        %v1019 = vpack.c.b16 %v1009, %v1008
        %v1020 = vpack.c.b16 %v1011, %v1010
        %v1021 = vpack.c.b16 %v1013, %v1012
        %1030 = vmatprep.subr.bf16.mxu0 0
        %1031 = vmatpush1.bf16.msra.mxu0 %v1014
        %1032 = vmatprep.subr.bf16.mxu0 0
        %1033 = vmatpush1.bf16.msra.mxu0 %v1015
        %1034 = vmatprep.subr.bf16.mxu0 0
        %1035 = vmatpush1.bf16.msra.mxu0 %v1016
        %1036 = vmatprep.subr.bf16.mxu0 0
        %1037 = vmatpush1.bf16.msra.mxu0 %v1017
        %1038 = vmatprep.subr.bf16.mxu0 0
        %1039 = vmatpush1.bf16.msra.mxu0 %v1018
        %1040 = vmatprep.subr.bf16.mxu0 0
        %1041 = vmatpush1.bf16.msra.mxu0 %v1019
        %1042 = vmatprep.subr.bf16.mxu0 0
        %1043 = vmatpush1.bf16.msra.mxu0 %v1020
        %1044 = vmatprep.subr.bf16.mxu0 0
        %1045 = vmatpush1.bf16.msra.mxu0 %v1021
        %1046 = vmatprep.subr.bf16.mxu0 0
        %1047 = vmatpush1.bf16.msra.mxu0 0
        %1048 = vmatprep.subr.bf16.mxu0 0
        %1049 = vmatpush1.bf16.msra.mxu0 0
        %1050 = vmatprep.subr.bf16.mxu0 0
        %1051 = vmatpush1.bf16.msra.mxu0 0
        %1052 = vmatprep.subr.bf16.mxu0 0
        %1053 = vmatpush1.bf16.msra.mxu0 0
        %1054 = vmatprep.subr.bf16.mxu0 0
        %1055 = vmatpush1.bf16.msra.mxu0 0
        %1056 = vmatprep.subr.bf16.mxu0 0
        %1057 = vmatpush1.bf16.msra.mxu0 0
        %1058 = vmatprep.subr.bf16.mxu0 0
        %1059 = vmatpush1.bf16.msra.mxu0 0
        %1060 = vmatprep.subr.bf16.mxu0 0
        %1061 = vmatpush1.bf16.msra.mxu0 0
        %1062 = vmatprep.mubr.bf16.mxu0 0
        %1063 = vmatmul.mubr.bf16.gmra.mrb[0].mxu0 %v958
        %v1064 = vpop.f32.mrb[0].mxu0
        %v1065 = vadd.f32 0.0, %v1064
        %v1066 = vpop.f32.mrb[0].mxu0
        %v1067 = vpop.f32.mrb[0].mxu0
        %v1068 = vadd.f32 0.0, %v1067
        %v1069 = vpop.f32.mrb[0].mxu0
        %1070 = vmatprep.mubr.bf16.mxu0 0
        %1071 = vmatmul.mubr.bf16.gmra.mrb[0].mxu0 %v959
        %v1072 = vpop.f32.mrb[0].mxu0
        %v1073 = vadd.f32 0.0, %v1072
        %v1074 = vpop.f32.mrb[0].mxu0
        %v1075 = vpop.f32.mrb[0].mxu0
        %v1076 = vadd.f32 0.0, %v1075
        %v1077 = vpop.f32.mrb[0].mxu0
        %1078 = vmatprep.mubr.bf16.mxu0 0
        %1079 = vmatmul.mubr.bf16.gmra.mrb[0].mxu0 %v960
        %v1080 = vpop.f32.mrb[0].mxu0
        %v1081 = vadd.f32 0.0, %v1080
        %v1082 = vpop.f32.mrb[0].mxu0
        %v1083 = vpop.f32.mrb[0].mxu0
        %v1084 = vadd.f32 0.0, %v1083
        %v1085 = vpop.f32.mrb[0].mxu0
        %1086 = vmatprep.mubr.bf16.mxu0 0
        %1087 = vmatmul.mubr.bf16.gmra.mrb[0].mxu0 %v961
        %v1088 = vpop.f32.mrb[0].mxu0
        %v1089 = vadd.f32 0.0, %v1088
        %v1090 = vpop.f32.mrb[0].mxu0
        %v1091 = vpop.f32.mrb[0].mxu0
        %v1092 = vadd.f32 0.0, %v1091
        %v1093 = vpop.f32.mrb[0].mxu0
        %1094 = vmatprep.mubr.bf16.mxu0 0
        %1095 = vmatmul.mubr.bf16.gmra.mrb[0].mxu0 %v962
        %v1096 = vpop.f32.mrb[0].mxu0
        %v1097 = vadd.f32 0.0, %v1096
        %v1098 = vpop.f32.mrb[0].mxu0
        %v1099 = vpop.f32.mrb[0].mxu0
        %v1100 = vadd.f32 0.0, %v1099
        %v1101 = vpop.f32.mrb[0].mxu0
        %1102 = vmatprep.mubr.bf16.mxu0 0
        %1103 = vmatmul.mubr.bf16.gmra.mrb[0].mxu0 %v963
        %v1104 = vpop.f32.mrb[0].mxu0
        %v1105 = vadd.f32 0.0, %v1104
        %v1106 = vpop.f32.mrb[0].mxu0
        %v1107 = vpop.f32.mrb[0].mxu0
        %v1108 = vadd.f32 0.0, %v1107
        %v1109 = vpop.f32.mrb[0].mxu0
        %1110 = vmatprep.mubr.bf16.mxu0 0
        %1111 = vmatmul.mubr.bf16.gmra.mrb[0].mxu0 %v964
        %v1112 = vpop.f32.mrb[0].mxu0
        %v1113 = vadd.f32 0.0, %v1112
        %v1114 = vpop.f32.mrb[0].mxu0
        %v1115 = vpop.f32.mrb[0].mxu0
        %v1116 = vadd.f32 0.0, %v1115
        %v1117 = vpop.f32.mrb[0].mxu0
        %1118 = vmatprep.mubr.bf16.mxu0 0
        %1119 = vmatmul.mubr.bf16.gmra.mrb[0].mxu0 %v965
        %v1120 = vpop.f32.mrb[0].mxu0
        %v1121 = vadd.f32 0.0, %v1120
        %v1122 = vpop.f32.mrb[0].mxu0
        %v1123 = vpop.f32.mrb[0].mxu0
        %v1124 = vadd.f32 0.0, %v1123
        %v1125 = vpop.f32.mrb[0].mxu0
        %1126 = vdwg.mxu0
        %v1143 = vunpack.c.l.b16 %v942
        %v1144 = vunpack.c.l.b16 %v943
        %v1145 = vunpack.c.l.b16 %v944
        %v1146 = vunpack.c.l.b16 %v945
        %v1147 = vunpack.c.l.b16 %v946
        %v1148 = vunpack.c.l.b16 %v947
        %v1149 = vunpack.c.l.b16 %v948
        %v1150 = vunpack.c.l.b16 %v949
        %v1151 = vunpack.c.l.b16 %v950
        %v1152 = vunpack.c.l.b16 %v951
        %v1153 = vunpack.c.l.b16 %v952
        %v1154 = vunpack.c.l.b16 %v953
        %v1155 = vunpack.c.l.b16 %v954
        %v1156 = vunpack.c.l.b16 %v955
        %v1157 = vunpack.c.l.b16 %v956
        %v1158 = vunpack.c.l.b16 %v957
        %v1159 = vpack.c.b16 %v1144, %v1143
        %v1160 = vpack.c.b16 %v1146, %v1145
        %v1161 = vpack.c.b16 %v1148, %v1147
        %v1162 = vpack.c.b16 %v1150, %v1149
        %v1163 = vpack.c.b16 %v1152, %v1151
        %v1164 = vpack.c.b16 %v1154, %v1153
        %v1165 = vpack.c.b16 %v1156, %v1155
        %v1166 = vpack.c.b16 %v1158, %v1157
        %1175 = vmatprep.subr.bf16.mxu0 0
        %1176 = vmatpush1.bf16.msra.mxu0 %v1159
        %1177 = vmatprep.subr.bf16.mxu0 0
        %1178 = vmatpush1.bf16.msra.mxu0 %v1160
        %1179 = vmatprep.subr.bf16.mxu0 0
        %1180 = vmatpush1.bf16.msra.mxu0 %v1161
        %1181 = vmatprep.subr.bf16.mxu0 0
        %1182 = vmatpush1.bf16.msra.mxu0 %v1162
        %1183 = vmatprep.subr.bf16.mxu0 0
        %1184 = vmatpush1.bf16.msra.mxu0 %v1163
        %1185 = vmatprep.subr.bf16.mxu0 0
        %1186 = vmatpush1.bf16.msra.mxu0 %v1164
        %1187 = vmatprep.subr.bf16.mxu0 0
        %1188 = vmatpush1.bf16.msra.mxu0 %v1165
        %1189 = vmatprep.subr.bf16.mxu0 0
        %1190 = vmatpush1.bf16.msra.mxu0 %v1166
        %1191 = vmatprep.subr.bf16.mxu0 0
        %1192 = vmatpush1.bf16.msra.mxu0 0
        %1193 = vmatprep.subr.bf16.mxu0 0
        %1194 = vmatpush1.bf16.msra.mxu0 0
        %1195 = vmatprep.subr.bf16.mxu0 0
        %1196 = vmatpush1.bf16.msra.mxu0 0
        %1197 = vmatprep.subr.bf16.mxu0 0
        %1198 = vmatpush1.bf16.msra.mxu0 0
        %1199 = vmatprep.subr.bf16.mxu0 0
        %1200 = vmatpush1.bf16.msra.mxu0 0
        %1201 = vmatprep.subr.bf16.mxu0 0
        %1202 = vmatpush1.bf16.msra.mxu0 0
        %1203 = vmatprep.subr.bf16.mxu0 0
        %1204 = vmatpush1.bf16.msra.mxu0 0
        %1205 = vmatprep.subr.bf16.mxu0 0
        %1206 = vmatpush1.bf16.msra.mxu0 0
        %1207 = vmatprep.mubr.bf16.mxu0 0
        %1208 = vmatmul.mubr.bf16.gmra.mrb[0].mxu0 %v934
        %v1209 = vpop.f32.mrb[0].mxu0
        %v1210 = vadd.f32 %v1065, %v1209
        %v1211 = vpop.f32.mrb[0].mxu0
        %v1212 = vpop.f32.mrb[0].mxu0
        %v1213 = vadd.f32 %v1068, %v1212
        %v1214 = vpop.f32.mrb[0].mxu0
        %1215 = vmatprep.mubr.bf16.mxu0 0
        %1216 = vmatmul.mubr.bf16.gmra.mrb[0].mxu0 %v935
        %v1217 = vpop.f32.mrb[0].mxu0
        %v1218 = vadd.f32 %v1073, %v1217
        %v1219 = vpop.f32.mrb[0].mxu0
        %v1220 = vpop.f32.mrb[0].mxu0
        %v1221 = vadd.f32 %v1076, %v1220
        %v1222 = vpop.f32.mrb[0].mxu0
        %1223 = vmatprep.mubr.bf16.mxu0 0
        %1224 = vmatmul.mubr.bf16.gmra.mrb[0].mxu0 %v936
        %v1225 = vpop.f32.mrb[0].mxu0
        %v1226 = vadd.f32 %v1081, %v1225
        %v1227 = vpop.f32.mrb[0].mxu0
        %v1228 = vpop.f32.mrb[0].mxu0
        %v1229 = vadd.f32 %v1084, %v1228
        %v1230 = vpop.f32.mrb[0].mxu0
        %1231 = vmatprep.mubr.bf16.mxu0 0
        %1232 = vmatmul.mubr.bf16.gmra.mrb[0].mxu0 %v937
        %v1233 = vpop.f32.mrb[0].mxu0
        %v1234 = vadd.f32 %v1089, %v1233
        %v1235 = vpop.f32.mrb[0].mxu0
        %v1236 = vpop.f32.mrb[0].mxu0
        %v1237 = vadd.f32 %v1092, %v1236
        %v1238 = vpop.f32.mrb[0].mxu0
        %1239 = vmatprep.mubr.bf16.mxu0 0
        %1240 = vmatmul.mubr.bf16.gmra.mrb[0].mxu0 %v938
        %v1241 = vpop.f32.mrb[0].mxu0
        %v1242 = vadd.f32 %v1097, %v1241
        %v1243 = vpop.f32.mrb[0].mxu0
        %v1244 = vpop.f32.mrb[0].mxu0
        %v1245 = vadd.f32 %v1100, %v1244
        %v1246 = vpop.f32.mrb[0].mxu0
        %1247 = vmatprep.mubr.bf16.mxu0 0
        %1248 = vmatmul.mubr.bf16.gmra.mrb[0].mxu0 %v939
        %v1249 = vpop.f32.mrb[0].mxu0
        %v1250 = vadd.f32 %v1105, %v1249
        %v1251 = vpop.f32.mrb[0].mxu0
        %v1252 = vpop.f32.mrb[0].mxu0
        %v1253 = vadd.f32 %v1108, %v1252
        %v1254 = vpop.f32.mrb[0].mxu0
        %1255 = vmatprep.mubr.bf16.mxu0 0
        %1256 = vmatmul.mubr.bf16.gmra.mrb[0].mxu0 %v940
        %v1257 = vpop.f32.mrb[0].mxu0
        %v1258 = vadd.f32 %v1113, %v1257
        %v1259 = vpop.f32.mrb[0].mxu0
        %v1260 = vpop.f32.mrb[0].mxu0
        %v1261 = vadd.f32 %v1116, %v1260
        %v1262 = vpop.f32.mrb[0].mxu0
        %1263 = vmatprep.mubr.bf16.mxu0 0
        %1264 = vmatmul.mubr.bf16.gmra.mrb[0].mxu0 %v941
        %v1265 = vpop.f32.mrb[0].mxu0
        %v1266 = vadd.f32 %v1121, %v1265
        %v1267 = vpop.f32.mrb[0].mxu0
        %v1268 = vpop.f32.mrb[0].mxu0
        %v1269 = vadd.f32 %v1124, %v1268
        %v1270 = vpop.f32.mrb[0].mxu0
        %1271 = vdwg.mxu0
        %v1272 = vld [vmem:[%s5] sm:$0x1]
        %v1274 = vlaneseq
        %v1275 = vshrl.u32 %v1274, 7
        %v1276 = vsub.s32 0, %v1275
        %v1277 = vrot.slane %v1272, %v1276
        %v1279 = vadd.f32 %v1210, %v1277
        %v1280 = vadd.f32 %v1213, %v1277
        %v1281 = vadd.f32 %v1218, %v1277
        %v1282 = vadd.f32 %v1221, %v1277
        %v1283 = vadd.f32 %v1226, %v1277
        %v1284 = vadd.f32 %v1229, %v1277
        %v1285 = vadd.f32 %v1234, %v1277
        %v1286 = vadd.f32 %v1237, %v1277
        %v1287 = vadd.f32 %v1242, %v1277
        %v1288 = vadd.f32 %v1245, %v1277
        %v1289 = vadd.f32 %v1250, %v1277
        %v1290 = vadd.f32 %v1253, %v1277
        %v1291 = vadd.f32 %v1258, %v1277
        %v1292 = vadd.f32 %v1261, %v1277
        %v1293 = vadd.f32 %v1266, %v1277
        %v1294 = vadd.f32 %v1269, %v1277
        %1295 = vst [vmem:[%s352] sm:$0xff] %v1279
        %1296 = vst [vmem:[%s352 + $0x8] sm:$0xff] %v1280
        %1297 = vst [vmem:[%s352 + $0x10] sm:$0xff] %v1281
        %1298 = vst [vmem:[%s352 + $0x18] sm:$0xff] %v1282
        %1299 = vst [vmem:[%s352 + $0x20] sm:$0xff] %v1283
        %1300 = vst [vmem:[%s352 + $0x28] sm:$0xff] %v1284
        %1301 = vst [vmem:[%s352 + $0x30] sm:$0xff] %v1285
        %1302 = vst [vmem:[%s352 + $0x38] sm:$0xff] %v1286
        %1303 = vst [vmem:[%s352 + $0x40] sm:$0xff] %v1287
        %1304 = vst [vmem:[%s352 + $0x48] sm:$0xff] %v1288
        %1305 = vst [vmem:[%s352 + $0x50] sm:$0xff] %v1289
        %1306 = vst [vmem:[%s352 + $0x58] sm:$0xff] %v1290
        %1307 = vst [vmem:[%s352 + $0x60] sm:$0xff] %v1291
        %1308 = vst [vmem:[%s352 + $0x68] sm:$0xff] %v1292
        %1309 = vst [vmem:[%s352 + $0x70] sm:$0xff] %v1293
        %1310 = vst [vmem:[%s352 + $0x78] sm:$0xff] %v1294
        %s1311 = sand.u32 %s171, 1
        %s1312 = scalar_lea.sflag [#allocation4], %s1311
        %s1313 = sand.u32 %s171, 1
        %s1314 = smul.addr %s1313, 128
        %s1315 = scalar_lea.vmem [#allocation11], %s1314
        // Predicated region
        $region65: #{tpu_custom_call.1} parent=43 // pred_check
          %p1316 = pneg %p181
        $region66: #{tpu_custom_call.1} parent=43 // pred_check_branch
          %1318 = sbr.rel (%p1316) target = $region68
        $region67: #{tpu_custom_call.1} parent=43 // pred_region
          %s1319 = smul.u32 16, %s27
          %s1321 = ssub.s32 2048, 2048
          %1322 = vsyncadd %s1312, %s1321
          %s1323 = smul.addr %s1319, 128
          %s1324 = scalar_lea.hbm %s6, %s1323
          %s1325 = sshll.u32 %s1315, 4
          %s1326 = int_to_ptr.vmem [resolvable:$true] %s1325
          %1331 = dma.vmem_to_hbm [thread:$0]  %s1326, 2048, %s1324, %s1312, 128, 128, 8
        $region68: #{tpu_custom_call.1} parent=43 // pred_fallthru
          _
      $region44: #{tpu_custom_call.1} parent=5 // pred_fallthru
        _
      %p1332 = scmp.le.s32.totalorder 2, %s22
      // Predicated region
      $region69: #{tpu_custom_call.1} parent=5 // pred_check
        %p1333 = pneg %p1332
      $region70: #{tpu_custom_call.1} parent=5 // pred_check_branch
        %1335 = sbr.rel (%p1333) target = $region72
      $region71: #{tpu_custom_call.1} parent=5 // pred_region
        %s1336 = ssub.s32 %s22, 2
        // Predicated region
        $region73: #{tpu_custom_call.1} parent=71 // pred_check
          %p1337 = pneg %p187
        $region74: #{tpu_custom_call.1} parent=71 // pred_check_branch
          %1339 = sbr.rel (%p1337) target = $region76
        $region75: #{tpu_custom_call.1} parent=71 // pred_region
          %s1340 = sand.u32 %s172, 1
          %s1341 = scalar_lea.sflag [#allocation4], %s1340
          %s1342 = sand.u32 %s172, 1
          %s1343 = smul.addr %s1342, 128
          %s1344 = scalar_lea.vmem [#allocation11], %s1343
          %1345 = dma.done %s1341, 2048
        $region76: #{tpu_custom_call.1} parent=71 // pred_fallthru
          _
      $region72: #{tpu_custom_call.1} parent=5 // pred_fallthru
        _
    $region6: #{tpu_custom_call.1} parent=1 // loop_footer
      %s26 = sadd.s32 1, %s22
    $region7: #{tpu_custom_call.1} parent=1 // loop_footer_branch
      %21 = sbr.rel target = $region3
    $region8: #{tpu_custom_call.1} parent=1 // loop_exit
      _
    %1346 = vsyncpa [#allocation3], 1
    %s1347 = scalar_lea.sflag [#allocation3], 1
    %1348 = vsyncpa %s1347, 1
    %1349 = vsyncpa [#allocation6], 1
    %s1350 = scalar_lea.sflag [#allocation6], 1
    %1351 = vsyncpa %s1350, 1
    %1352 = vsyncpa [#allocation9], 1
    %1353 = vsyncpa [#allocation4], 1
    %s1354 = scalar_lea.sflag [#allocation4], 1
    %1355 = vsyncpa %s1354, 1

</llo_original>
